<compile_context>
chip_gen: v5e
topology: v5e:2x2
jax: 0.10.0
libtpu: 0.0.40
codegen_flags: <defaults>
</compile_context>

<pallas_src>
import functools

import jax
import jax.numpy as jnp
from jax.experimental import pallas as pl
from jax.experimental.pallas import tpu as pltpu

LANE = 128
SUBLANE = 8


def _focal_loss_kernel(prob_ref, t_ref, out_ref, acc_ref, *,
                       tr, steps, rows, need_mask):
    s = pl.program_id(0)   # "parallel" split axis
    r = pl.program_id(1)   # "arbitrary" reduction axis

    @pl.when(r == 0)
    def _():
        acc_ref[...] = jnp.zeros_like(acc_ref)

    prob = prob_ref[...]
    t = t_ref[...]
    loss = t * (-jnp.log(prob))          # 1 transcendental / element

    if need_mask:
        # Zero rows past the valid range (partial last block / overflow steps).
        row0 = (s * steps + r) * tr
        row_ids = row0 + jax.lax.broadcasted_iota(jnp.int32, (tr, LANE), 0)
        loss = jnp.where(row_ids < rows, loss, 0.0)

    # (tr,128) -> (8,128): vreg-wise adds, stays entirely on the VPU.
    acc_ref[...] += jnp.sum(loss.reshape(tr // SUBLANE, SUBLANE, LANE), axis=0)

    @pl.when(r == steps - 1)
    def _():
        out_ref[0] = acc_ref[...]        # lane-dense (8,128) partial per split


def focal_loss_fix(prob, idxs, fix_probs, gamma=0.0):
    """JAX/Pallas equivalent of FocalLoss_fix(gamma, fix_probs)(prob, idxs)."""
    assert gamma >= 0
    n = int(prob.size)

    # Precompute (1 - fix_probs)**gamma on the tiny parameter table: removes
    # two exp/log transcendentals per element from the hot path.
    t_table = (1.0 - fix_probs.astype(jnp.float32)) ** float(gamma)
    # TODO(synk): gather stays in plain JAX; an in-kernel gather from a
    # VMEM-resident table would save one N*4B HBM write+read pass.
    t_flat = t_table[idxs.reshape(-1)]
    prob_flat = prob.reshape(-1).astype(jnp.float32)

    # Pad with neutral values (prob=1 -> -log(1)=0, t=0 -> weight 0) to a
    # multiple of 8*128 so rows is sublane-aligned.  Single fused jnp.pad.
    tile_elems = SUBLANE * LANE
    padded = ((n + tile_elems - 1) // tile_elems) * tile_elems
    pad = padded - n
    if pad:
        prob_flat = jnp.pad(prob_flat, (0, pad), constant_values=1.0)
        t_flat = jnp.pad(t_flat, (0, pad), constant_values=0.0)

    rows = padded // LANE                      # multiple of 8
    prob2 = prob_flat.reshape(rows, LANE)
    t2 = t_flat.reshape(rows, LANE)

    # Tile the reduction: TR rows per block (2 inputs x 2 pipeline buffers
    # x TR x 128 x 4B <= 8 MiB for TR = 2048).
    TR = min(2048, rows)
    nb = pl.cdiv(rows, TR)                     # number of row blocks
    splits = 2 if nb >= 2 else 1               # v7x dual-TC partial sums
    steps = pl.cdiv(nb, splits)
    need_mask = (splits * steps * TR) != rows

    kernel = functools.partial(_focal_loss_kernel, tr=TR, steps=steps,
                               rows=rows, need_mask=need_mask)
    # Clamp overflow steps to the last valid block; their contribution is
    # masked to zero inside the kernel.
    idx_map = lambda s, r: (jnp.minimum(s * steps + r, nb - 1), 0)

    partials = pl.pallas_call(
        kernel,
        out_shape=jax.ShapeDtypeStruct((splits, SUBLANE, LANE), jnp.float32),
        grid_spec=pltpu.PrefetchScalarGridSpec(
            num_scalar_prefetch=0,
            grid=(splits, steps),
            in_specs=[
                pl.BlockSpec((TR, LANE), idx_map),
                pl.BlockSpec((TR, LANE), idx_map),
            ],
            out_specs=pl.BlockSpec((1, SUBLANE, LANE), lambda s, r: (s, 0, 0)),
            scratch_shapes=[pltpu.VMEM((SUBLANE, LANE), jnp.float32)],
        ),
        compiler_params=pltpu.CompilerParams(
            dimension_semantics=("parallel", "arbitrary")),
        cost_estimate=pl.CostEstimate(
            flops=3 * n,
            transcendentals=n,
            bytes_accessed=8 * padded + splits * SUBLANE * LANE * 4),
    )(prob2, t2)

    # Tiny (splits,8,128) cross-lane reduce + mean outside the hot loop.
    return jnp.sum(partials) * (1.0 / n)


if __name__ == "__main__":
    key = jax.random.PRNGKey(0)
    k1, k2, k3 = jax.random.split(key, 3)

    M = 512   # size of the fix_probs parameter table
    N = 256   # number of samples (size of prob / idxs)
    gamma = 2.0

    # Deterministic synthetic "parameters" and inputs (no checkpoint loading).
    fix_probs = jax.random.uniform(k1, (M,), jnp.float32, 1e-3, 1.0 - 1e-3)
    prob = jax.random.uniform(k2, (N,), jnp.float32, 1e-3, 1.0 - 1e-3)
    idxs = jax.random.randint(k3, (N,), 0, M)

    out = focal_loss_fix(prob, idxs, fix_probs, gamma=gamma)
    out = jax.block_until_ready(out)

    # Pure-JAX reference check of the PyTorch semantics.
    ref = jnp.mean((1.0 - fix_probs[idxs]) ** gamma * (-jnp.log(prob)))
    assert jnp.allclose(out, ref, rtol=1e-5, atol=1e-6), (out, ref)

    print("KERNEL_OK")
</pallas_src>

<mosaic_0001>
module attributes {stable_mosaic.version = 11 : i64} {
  func.func @_focal_loss_kernel(%arg0: i32, %arg1: i32, %arg2: memref<8x128xf32, #tpu.memory_space<vmem>>, %arg3: memref<8x128xf32, #tpu.memory_space<vmem>>, %arg4: memref<1x8x128xf32, #tpu.memory_space<vmem>>, %arg5: memref<8x128xf32, #tpu.memory_space<vmem>>) attributes {dimension_semantics = [#tpu.dimension_semantics<parallel>, #tpu.dimension_semantics<arbitrary>], iteration_bounds = array<i64: 1, 1>, scalar_prefetch = 0 : i64, scratch_operands = 1 : i64, tpu.core_type = #tpu.core_type<tc>, window_params = [{transform_indices = @transform_0, window_bounds = array<i64: 8, 128>}, {transform_indices = @transform_1, window_bounds = array<i64: 8, 128>}, {transform_indices = @transform_2, window_bounds = array<i64: 1, 8, 128>}]} {
    %c0_i32 = arith.constant 0 : i32
    %0 = arith.cmpi eq, %arg1, %c0_i32 : i32
    %1 = arith.extui %0 : i1 to i32
    %c0_i32_0 = arith.constant 0 : i32
    %2 = arith.cmpi ne, %1, %c0_i32_0 : i32
    scf.if %2 {
      %cst_11 = arith.constant 0.000000e+00 : f32
      %17 = vector.broadcast %cst_11 : f32 to vector<8x128xf32>
      %c0_12 = arith.constant 0 : index
      %c0_13 = arith.constant 0 : index
      %18 = vector.load %arg5[%c0_12, %c0_13] : memref<8x128xf32, #tpu.memory_space<vmem>>, vector<8x128xf32>
      tpu.vector_store %arg5[%c0_12, %c0_13], %17 {strides = array<i32>} : memref<8x128xf32, #tpu.memory_space<vmem>>, vector<8x128xf32>,
    } else {
    }
    %c0 = arith.constant 0 : index
    %c0_1 = arith.constant 0 : index
    %3 = vector.load %arg2[%c0, %c0_1] : memref<8x128xf32, #tpu.memory_space<vmem>>, vector<8x128xf32>
    %c0_2 = arith.constant 0 : index
    %c0_3 = arith.constant 0 : index
    %4 = vector.load %arg3[%c0_2, %c0_3] : memref<8x128xf32, #tpu.memory_space<vmem>>, vector<8x128xf32>
    %5 = math.log %3 : vector<8x128xf32>
    %cst = arith.constant 0.000000e+00 : f32
    %6 = vector.broadcast %cst : f32 to vector<8x128xf32>
    %7 = arith.subf %6, %5 : vector<8x128xf32>
    %8 = arith.mulf %4, %7 : vector<8x128xf32>
    %c0_4 = arith.constant 0 : index
    %c0_5 = arith.constant 0 : index
    %9 = vector.load %arg5[%c0_4, %c0_5] : memref<8x128xf32, #tpu.memory_space<vmem>>, vector<8x128xf32>
    %10 = vector.shape_cast %8 : vector<8x128xf32> to vector<1x8x128xf32>
    %cst_6 = arith.constant dense<0.000000e+00> : vector<8x128xf32>
    %11 = vector.multi_reduction <add>, %10, %cst_6 [0] : vector<1x8x128xf32> to vector<8x128xf32>
    %12 = arith.addf %9, %11 : vector<8x128xf32>
    %c0_7 = arith.constant 0 : index
    %c0_8 = arith.constant 0 : index
    %13 = vector.load %arg5[%c0_7, %c0_8] : memref<8x128xf32, #tpu.memory_space<vmem>>, vector<8x128xf32>
    tpu.vector_store %arg5[%c0_7, %c0_8], %12 {strides = array<i32>} : memref<8x128xf32, #tpu.memory_space<vmem>>, vector<8x128xf32>,
    %c0_i32_9 = arith.constant 0 : i32
    %14 = arith.cmpi eq, %arg1, %c0_i32_9 : i32
    %15 = arith.extui %14 : i1 to i32
    %c0_i32_10 = arith.constant 0 : i32
    %16 = arith.cmpi ne, %15, %c0_i32_10 : i32
    scf.if %16 {
      %c0_11 = arith.constant 0 : index
      %c0_12 = arith.constant 0 : index
      %17 = vector.load %arg5[%c0_11, %c0_12] : memref<8x128xf32, #tpu.memory_space<vmem>>, vector<8x128xf32>
      %c0_13 = arith.constant 0 : index
      %c0_14 = arith.constant 0 : index
      %c0_15 = arith.constant 0 : index
      %18 = vector.load %arg4[%c0_13, %c0_14, %c0_15] : memref<1x8x128xf32, #tpu.memory_space<vmem>>, vector<1x8x128xf32>
      %19 = vector.shape_cast %18 : vector<1x8x128xf32> to vector<8x128xf32>
      %20 = vector.shape_cast %17 : vector<8x128xf32> to vector<1x8x128xf32>
      tpu.vector_store %arg4[%c0_13, %c0_14, %c0_15], %20 {strides = array<i32>} : memref<1x8x128xf32, #tpu.memory_space<vmem>>, vector<1x8x128xf32>,
    } else {
    }
    return
  }
  func.func @transform_0(%arg0: i32, %arg1: i32) -> (i32, i32) {
    %c1_i32 = arith.constant 1 : i32
    %0 = arith.muli %arg0, %c1_i32 : i32
    %1 = arith.addi %0, %arg1 : i32
    %c0_i32 = arith.constant 0 : i32
    %2 = arith.minsi %1, %c0_i32 : i32
    %c0_i32_0 = arith.constant 0 : i32
    %c0_i32_1 = arith.constant 0 : i32
    return %2, %c0_i32_0 : i32, i32
  }
  func.func @transform_1(%arg0: i32, %arg1: i32) -> (i32, i32) {
    %c1_i32 = arith.constant 1 : i32
    %0 = arith.muli %arg0, %c1_i32 : i32
    %1 = arith.addi %0, %arg1 : i32
    %c0_i32 = arith.constant 0 : i32
    %2 = arith.minsi %1, %c0_i32 : i32
    %c0_i32_0 = arith.constant 0 : i32
    %c0_i32_1 = arith.constant 0 : i32
    return %2, %c0_i32_0 : i32, i32
  }
  func.func @transform_2(%arg0: i32, %arg1: i32) -> (i32, i32, i32) {
    %c0_i32 = arith.constant 0 : i32
    %c0_i32_0 = arith.constant 0 : i32
    %c0_i32_1 = arith.constant 0 : i32
    return %arg0, %c0_i32, %c0_i32_0 : i32, i32, i32
  }
}

</mosaic_0001>

<llo_original>
// kernel: tpu_custom_call.1
$region0: #{tpu_custom_call.1}
  #allocation0 [shape = 'u32[]', space=smem, size = 0x4, offset = 0x4, fixed_abs, tag = 'smem constant byte address 0x4 - core index']
  #allocation1 [shape = 'u32[72,128]{1,0:T(1,128)}', space=vmem, size = 0x9000, scoped, tag = 'internal scratch']
  #allocation2 [shape = 'f32[8,128]{1,0:T(8,128)}', space=vmem, size = 0x1000, scoped, tag = 'scratch operand']
  %s0 = inlined_call_operand.hbm [shape: f32[8,128], index: 0, kind: input, shape index: {}]
  %s1 = inlined_call_operand.hbm [shape: f32[8,128], index: 1, kind: input, shape index: {}]
  %s2 = inlined_call_operand.hbm [shape: f32[1,8,128], index: 2, kind: output, shape index: {}]
  %s3 = sld [smem:[#allocation0]]
  $region34: #{tpu_custom_call.1} parent=0
    _
  %s5 = ssub.s32 1, %s3
  %s6 = scalar_select 0, %s5, %s3
  $region1: #{tpu_custom_call.1} parent=0
    #allocation3 [shape = 'u8[4096]{0}', space=vmem, size = 0x1000, scoped, tag = 'input window, operand 0, single buffered']
    #allocation4 [shape = 's32[1]{0}', space=sflag, size = 0x4, scoped, tag = 'scoped memory for tpu_custom_call.1']
    #allocation5 [shape = 's32[1]{0}', space=sflag, size = 0x4, scoped, tag = 'scoped memory for tpu_custom_call.1']
    #allocation6 [shape = 'u8[4096]{0}', space=vmem, size = 0x1000, scoped, tag = 'input window, operand 1, single buffered']
    #allocation7 [shape = 's32[1]{0}', space=sflag, size = 0x4, scoped, tag = 'scoped memory for tpu_custom_call.1']
    #allocation8 [shape = 'u8[4096]{0}', space=vmem, size = 0x1000, scoped, tag = 'output window, operand 0, single buffered']
    %7 = vsyncpa [#allocation4], 0
    %8 = vsyncpa [#allocation7], 0
    %9 = vsyncpa [#allocation5], 0
    // Predicated region
    $region2: #{tpu_custom_call.1} parent=1 // pred_check
      _
    $region3: #{tpu_custom_call.1} parent=1 // pred_check_branch
      %11 = sbr.rel (0) target = $region5
    $region4: #{tpu_custom_call.1} parent=1 // pred_region
      %s12 = sadd.s32 0, 0
      %p13 = scmp.lt.s32.totalorder %s12, 0
      %s14 = scalar_select %p13, %s12, 0
      %16 = vsyncadd [#allocation4], 0
      %s17 = smul.addr %s14, 8
      %s18 = scalar_lea.hbm %s0, %s17
      %s20 = sshll.u32 %s18, 4
      %s21 = int_to_ptr.hbm [resolvable:$true] %s20
      %s22 = sshll.u32 [#allocation3], 4
      %s23 = int_to_ptr.vmem [resolvable:$true] %s22
      %25 = dma.hbm_to_vmem [thread:$0]  %s21, 128, %s23, [#allocation4]
    $region5: #{tpu_custom_call.1} parent=1 // pred_fallthru
      _
    // Predicated region
    $region6: #{tpu_custom_call.1} parent=1 // pred_check
      _
    $region7: #{tpu_custom_call.1} parent=1 // pred_check_branch
      %27 = sbr.rel (0) target = $region9
    $region8: #{tpu_custom_call.1} parent=1 // pred_region
      %s28 = sadd.s32 0, 0
      %p29 = scmp.lt.s32.totalorder %s28, 0
      %s30 = scalar_select %p29, %s28, 0
      %32 = vsyncadd [#allocation7], 0
      %s33 = smul.addr %s30, 8
      %s34 = scalar_lea.hbm %s1, %s33
      %s36 = sshll.u32 %s34, 4
      %s37 = int_to_ptr.hbm [resolvable:$true] %s36
      %s38 = sshll.u32 [#allocation6], 4
      %s39 = int_to_ptr.vmem [resolvable:$true] %s38
      %41 = dma.hbm_to_vmem [thread:$0]  %s37, 128, %s39, [#allocation7]
    $region9: #{tpu_custom_call.1} parent=1 // pred_fallthru
      _
    // Predicated region
    $region10: #{tpu_custom_call.1} parent=1 // pred_check
      _
    $region11: #{tpu_custom_call.1} parent=1 // pred_check_branch
      %43 = sbr.rel (0) target = $region13
    $region12: #{tpu_custom_call.1} parent=1 // pred_region
      %45 = dma.done [#allocation4], 128
    $region13: #{tpu_custom_call.1} parent=1 // pred_fallthru
      _
    // Predicated region
    $region14: #{tpu_custom_call.1} parent=1 // pred_check
      _
    $region15: #{tpu_custom_call.1} parent=1 // pred_check_branch
      %47 = sbr.rel (0) target = $region17
    $region16: #{tpu_custom_call.1} parent=1 // pred_region
      %49 = dma.done [#allocation7], 128
    $region17: #{tpu_custom_call.1} parent=1 // pred_fallthru
      _
    %s50 = sadd.s32 0, 0
    %p51 = scmp.lt.s32.totalorder %s50, 0
    %s52 = scalar_select %p51, %s50, 0
    %s53 = sadd.s32 0, 0
    %p54 = scmp.lt.s32.totalorder %s53, 0
    %s55 = scalar_select %p54, %s53, 0
    %p56 = scmp.eq.s32.totalorder 0, 0
    // Predicated region
    $region18: #{tpu_custom_call.1} parent=1 // pred_check
      %p57 = pneg %p56
    $region19: #{tpu_custom_call.1} parent=1 // pred_check_branch
      %59 = sbr.rel (%p57) target = $region21
    $region20: #{tpu_custom_call.1} parent=1 // pred_region
      %60 = vst [vmem:[#allocation2] sm:$0xff] 0.0
    $region21: #{tpu_custom_call.1} parent=1 // pred_fallthru
      _
    %v61 = vld [vmem:[#allocation3] sm:$0xff]
    %v62 = vld [vmem:[#allocation6] sm:$0xff]
    %v63 = vlog2.pop %v61
    %v64 = vmul.f32 %v63, 0.6931472
    %v65 = vsub.f32 0.0, %v64
    %v66 = vmul.f32 %v62, %v65
    %v67 = vld [vmem:[#allocation2] sm:$0xff]
    %v68 = vadd.f32 %v66, 0.0
    %v69 = vadd.f32 %v67, %v68
    %70 = vst [vmem:[#allocation2] sm:$0xff] %v69
    // Predicated region
    $region22: #{tpu_custom_call.1} parent=1 // pred_check
      %p71 = pneg %p56
    $region23: #{tpu_custom_call.1} parent=1 // pred_check_branch
      %73 = sbr.rel (%p71) target = $region25
    $region24: #{tpu_custom_call.1} parent=1 // pred_region
      %v74 = vld [vmem:[#allocation2] sm:$0xff]
      %75 = vst [vmem:[#allocation8] sm:$0xff] %v74
    $region25: #{tpu_custom_call.1} parent=1 // pred_fallthru
      _
    // Predicated region
    $region26: #{tpu_custom_call.1} parent=1 // pred_check
      _
    $region27: #{tpu_custom_call.1} parent=1 // pred_check_branch
      %77 = sbr.rel (0) target = $region29
    $region28: #{tpu_custom_call.1} parent=1 // pred_region
      %79 = vsyncadd [#allocation5], 0
      %s81 = sshll.u32 [#allocation8], 4
      %s82 = int_to_ptr.vmem [resolvable:$true] %s81
      %s83 = sshll.u32 %s2, 4
      %s84 = int_to_ptr.hbm [resolvable:$true] %s83
      %86 = dma.vmem_to_hbm [thread:$0]  %s82, 128, %s84, [#allocation5]
    $region29: #{tpu_custom_call.1} parent=1 // pred_fallthru
      _
    // Predicated region
    $region30: #{tpu_custom_call.1} parent=1 // pred_check
      _
    $region31: #{tpu_custom_call.1} parent=1 // pred_check_branch
      %88 = sbr.rel (0) target = $region33
    $region32: #{tpu_custom_call.1} parent=1 // pred_region
      %90 = dma.done [#allocation5], 128
    $region33: #{tpu_custom_call.1} parent=1 // pred_fallthru
      _
    %91 = vsyncpa [#allocation4], 1
    %92 = vsyncpa [#allocation7], 1
    %93 = vsyncpa [#allocation5], 1

</llo_original>
